<compile_context>
chip_gen: v5e
topology: v5e:2x2
jax: 0.10.0
libtpu: 0.0.40
codegen_flags: <defaults>
</compile_context>

<pallas_src>
import functools

import jax
import jax.numpy as jnp
from jax.experimental import pallas as pl
from jax.experimental.pallas import tpu as pltpu

_LANES = 128
_SUBLANES = 8


def _round_up(x, m):
    return (x + m - 1) // m * m


def _tpu_budgets():
    """Generation-aware (block_cap_bytes, vmem_budget_bytes, vmem_limit_bytes)."""
    try:
        vmem_cap = pltpu.get_tpu_info().vmem_capacity_bytes
    except Exception:
        vmem_cap = 64 * 1024 * 1024  # unknown chip: assume the small (v7x) VMEM
    if vmem_cap >= 96 * 1024 * 1024:
        # v5e / v6e: 128 MiB physical VMEM.  v5e's scoped default is 16 MiB,
        # so the explicit vmem_limit raise below is required there.
        return 8 * 1024 * 1024, 48 * 1024 * 1024, 64 * 1024 * 1024
    # v7x: 64 MiB per TensorCore -- cap per-input blocks ~4 MiB, total <= 48 MiB.
    return 4 * 1024 * 1024, 32 * 1024 * 1024, 48 * 1024 * 1024


def _make_kernel(tile_s, S, n_l_tiles, per_split, n_split):
    needs_row_mask = (S % tile_s) != 0           # ragged last S-tile
    has_dup_step = (n_split * per_split) > n_l_tiles
    last = n_l_tiles - 1

    def kernel(mag_ref, h_ref, hm_out, hh_out, hm_acc, hh_acc):
        k = pl.program_id(2)                         # reduction step in split
        logical = pl.program_id(0) * per_split + k   # global S-tile index

        @pl.when(k == 0)
        def _():
            hm_acc[...] = jnp.zeros_like(hm_acc)
            hh_acc[...] = jnp.zeros_like(hh_acc)

        def accumulate(mask_rows):
            m = mag_ref[...].astype(jnp.float32)     # (tile_b, tile_s, 128)
            h = h_ref[...].astype(jnp.float32)
            if mask_rows:
                # Zero the garbage sublane rows of the ragged last S-tile.
                valid = S - logical * tile_s
                rows = jax.lax.broadcasted_iota(jnp.int32, m.shape, 1)
                keep = rows < valid
                zero = jnp.zeros_like(m)
                m = jnp.where(keep, m, zero)
                h = jnp.where(keep, h, zero)
            # Per-slab sublane collapse (XLU has slack) + VALU accumulate;
            # no cross-slab packing in the hot loop.
            hm_acc[...] += jnp.sum(h * m, axis=1, keepdims=True)
            hh_acc[...] += jnp.sum(h * h, axis=1, keepdims=True)

        if needs_row_mask:
            # Mask only on the real last S-tile; duplicate (clamped) steps of
            # an uneven split fall through both branches and contribute 0.
            @pl.when(logical == last)
            def _():
                accumulate(True)

            @pl.when(logical < last)
            def _():
                accumulate(False)
        elif has_dup_step:
            @pl.when(logical <= last)
            def _():
                accumulate(False)
        else:
            accumulate(False)

        @pl.when(k == per_split - 1)
        def _():
            hm_out[...] = hm_acc[...]
            hh_out[...] = hh_acc[...]

    return kernel


@functools.partial(
    jax.jit, static_argnames=("block_cap_bytes", "vmem_budget_bytes"))
def scale_head(mag, height, block_cap_bytes=None, vmem_budget_bytes=None):
    """mag, height: (B, ...) with matching shapes -> scale: (B,) float32."""
    assert mag.shape == height.shape
    B = mag.shape[0]
    L = 1
    for d in mag.shape[1:]:
        L *= d
    assert L > 0
    itemsize = jnp.dtype(mag.dtype).itemsize

    auto_cap, auto_budget, vmem_limit = _tpu_budgets()
    block_cap = auto_cap if block_cap_bytes is None else block_cap_bytes
    vmem_budget = auto_budget if vmem_budget_bytes is None else vmem_budget_bytes

    # (B, C, H, W) -> (B, S, 128): contiguous reshape = bitcast, no HBM pass.
    mag2 = mag.reshape(B, L)
    h2 = height.reshape(B, L)
    L128 = _round_up(L, _LANES)
    if L128 != L:
        # Rare fallback: minimal zero tail-pad to a lane multiple (zeros do not
        # change either sum).
        # TODO(synk): fold this pad into the input pipeline via allow_input_fusion.
        pad = ((0, 0), (0, L128 - L))
        mag2 = jnp.pad(mag2, pad)
        h2 = jnp.pad(h2, pad)
    S = L128 // _LANES
    mag3 = mag2.reshape(B, S, _LANES)
    h3 = h2.reshape(B, S, _LANES)

    # ---- Tile sizing: size blocks by TOTAL bytes (batch and reduction axes),
    # with headroom for the in-kernel f32 temporaries.
    fixed_row = (2 * _SUBLANES * _LANES * 4            # 2 accumulators
                 + 2 * 2 * _SUBLANES * _LANES * 4)     # 2 outputs x 2 buffers

    def per_row_bytes(ts):
        ts_pad = _round_up(ts, _SUBLANES)
        return (2 * 2 * ts_pad * _LANES * itemsize     # 2 inputs x 2 buffers
                + 3 * ts_pad * _LANES * 4              # elementwise f32 temps
                + fixed_row)

    denom = 2 * 2 * _LANES * itemsize + 3 * _LANES * 4
    cap_from_budget = max(
        _SUBLANES,
        (vmem_budget - fixed_row) // denom // _SUBLANES * _SUBLANES)
    cap_from_block = max(
        _SUBLANES,
        block_cap // (_LANES * itemsize) // _SUBLANES * _SUBLANES)
    tile_s_cap = min(cap_from_budget, cap_from_block)
    tile_s = S if S <= tile_s_cap else tile_s_cap     # full S or multiple of 8
    n_l_tiles = pl.cdiv(S, tile_s)

    tile_b = max(1, min(B, vmem_budget // per_row_bytes(tile_s)))
    n_b_tiles = pl.cdiv(B, tile_b)

    # v7x: when the batch axis has a single tile, split the reduction range in
    # two so both TensorCores stream HBM; partials are combined in the wrapper.
    # (Harmless on single-core v5e/v6e.)
    n_split = 2 if (n_b_tiles == 1 and n_l_tiles >= 2) else 1
    per_split = pl.cdiv(n_l_tiles, n_split)

    if n_split == 1:
        in_idx = lambda s, b, k: (b, k, 0)
    else:
        # Clamp so an uneven split never issues a fully out-of-bounds DMA;
        # the kernel skips the duplicate step's contribution.
        in_idx = lambda s, b, k: (
            b, jnp.minimum(s * per_split + k, n_l_tiles - 1), 0)
    out_idx = lambda s, b, k: (s, b, 0, 0)

    kernel = _make_kernel(tile_s, S, n_l_tiles, per_split, n_split)

    out_sds = jax.ShapeDtypeStruct((n_split, B, 1, _LANES), jnp.float32)
    hm_p, hh_p = pl.pallas_call(
        kernel,
        out_shape=(out_sds, out_sds),
        grid_spec=pltpu.PrefetchScalarGridSpec(
            num_scalar_prefetch=0,
            grid=(n_split, n_b_tiles, per_split),
            in_specs=[
                pl.BlockSpec((tile_b, tile_s, _LANES), in_idx),
                pl.BlockSpec((tile_b, tile_s, _LANES), in_idx),
            ],
            out_specs=[
                pl.BlockSpec((None, tile_b, 1, _LANES), out_idx),
                pl.BlockSpec((None, tile_b, 1, _LANES), out_idx),
            ],
            scratch_shapes=[
                pltpu.VMEM((tile_b, 1, _LANES), jnp.float32),
                pltpu.VMEM((tile_b, 1, _LANES), jnp.float32),
            ],
        ),
        compiler_params=pltpu.CompilerParams(
            dimension_semantics=("parallel", "parallel", "arbitrary"),
            vmem_limit_bytes=vmem_limit,
        ),
        cost_estimate=pl.CostEstimate(
            flops=4 * B * L128,
            transcendentals=0,
            bytes_accessed=(2 * B * L128 * itemsize
                            + 2 * n_split * B * _LANES * 4),
        ),
    )(mag3, h3)

    # Tiny final combine in XLA: sum lane partials over splits/lanes, divide.
    hm = jnp.sum(hm_p, axis=(0, 2, 3))
    hh = jnp.sum(hh_p, axis=(0, 2, 3))
    return hm / (hh + jnp.float32(0.01))


def _reference(mag, height):
    B = mag.shape[0]
    m = mag.reshape(B, -1).astype(jnp.float32)
    h = height.reshape(B, -1).astype(jnp.float32)
    denom = jnp.sum(h * h, axis=1) + 0.01
    return jnp.sum(h * m, axis=1) / denom


if __name__ == "__main__":
    key = jax.random.PRNGKey(0)
    keys = jax.random.split(key, 10)

    def check(mag, height, **kw):
        out = jax.block_until_ready(scale_head(mag, height, **kw))
        ref = _reference(mag, height)
        assert out.shape == (mag.shape[0],), out.shape
        assert jnp.allclose(out, ref, rtol=1e-4, atol=1e-5), (out, ref)
        return out

    # Main case: B=2, C=4, H=16, W=16  (L=1024 -> S=8, single step, no split).
    B, C, H, W = 2, 4, 16, 16
    mag = jax.random.normal(keys[0], (B, C, H, W), dtype=jnp.float32)
    height = jax.random.normal(keys[1], (B, C, H, W), dtype=jnp.float32)
    check(mag, height)

    # Ragged L = 3*5*7 = 105: exercises the minimal lane-pad fallback path.
    mag_r = jax.random.normal(keys[2], (2, 3, 5, 7), dtype=jnp.float32)
    h_r = jax.random.normal(keys[3], (2, 3, 5, 7), dtype=jnp.float32)
    check(mag_r, h_r)

    # Reduction split across cores + ragged last S-tile + clamped dup step
    # (S=40, tile_s=16 via a small block-cap override).
    mag_s = jax.random.normal(keys[4], (1, 5, 8, 128), dtype=jnp.float32)
    h_s = jax.random.normal(keys[5], (1, 5, 8, 128), dtype=jnp.float32)
    check(mag_s, h_s, block_cap_bytes=8192)

    # Reduction split with an even S tail but an odd tile count (dup-only path).
    mag_d = jax.random.normal(keys[6], (1, 3, 16, 128), dtype=jnp.float32)
    h_d = jax.random.normal(keys[7], (1, 3, 16, 128), dtype=jnp.float32)
    check(mag_d, h_d, block_cap_bytes=8192)

    # Multiple batch tiles including a partial last batch tile
    # (B=5, tile_b=2 via a small VMEM-budget override).
    mag_b = jax.random.normal(keys[8], (5, 4, 16, 16), dtype=jnp.float32)
    h_b = jax.random.normal(keys[9], (5, 4, 16, 16), dtype=jnp.float32)
    check(mag_b, h_b, vmem_budget_bytes=120_000)

    print("KERNEL_OK")
</pallas_src>

<mosaic_0001>
module attributes {stable_mosaic.version = 11 : i64} {
  func.func @kernel(%arg0: i32, %arg1: i32, %arg2: i32, %arg3: memref<2x8x128xf32, #tpu.memory_space<vmem>>, %arg4: memref<2x8x128xf32, #tpu.memory_space<vmem>>, %arg5: memref<1x2x1x128xf32, #tpu.memory_space<vmem>>, %arg6: memref<1x2x1x128xf32, #tpu.memory_space<vmem>>, %arg7: memref<2x1x128xf32, #tpu.memory_space<vmem>>, %arg8: memref<2x1x128xf32, #tpu.memory_space<vmem>>) attributes {dimension_semantics = [#tpu.dimension_semantics<parallel>, #tpu.dimension_semantics<parallel>, #tpu.dimension_semantics<arbitrary>], iteration_bounds = array<i64: 1, 1, 1>, scalar_prefetch = 0 : i64, scratch_operands = 2 : i64, tpu.core_type = #tpu.core_type<tc>, window_params = [{transform_indices = @transform_0, window_bounds = array<i64: 2, 8, 128>}, {transform_indices = @transform_1, window_bounds = array<i64: 2, 8, 128>}, {transform_indices = @transform_2, window_bounds = array<i64: 1, 2, 1, 128>}, {transform_indices = @transform_3, window_bounds = array<i64: 1, 2, 1, 128>}]} {
    %c0_i32 = arith.constant 0 : i32
    %0 = arith.cmpi eq, %arg2, %c0_i32 : i32
    %1 = arith.extui %0 : i1 to i32
    %c0_i32_0 = arith.constant 0 : i32
    %2 = arith.cmpi ne, %1, %c0_i32_0 : i32
    scf.if %2 {
      %cst_21 = arith.constant 0.000000e+00 : f32
      %20 = vector.broadcast %cst_21 : f32 to vector<2x1x128xf32>
      %c0_22 = arith.constant 0 : index
      %c0_23 = arith.constant 0 : index
      %c0_24 = arith.constant 0 : index
      %21 = vector.load %arg7[%c0_22, %c0_23, %c0_24] : memref<2x1x128xf32, #tpu.memory_space<vmem>>, vector<2x1x128xf32>
      tpu.vector_store %arg7[%c0_22, %c0_23, %c0_24], %20 {strides = array<i32>} : memref<2x1x128xf32, #tpu.memory_space<vmem>>, vector<2x1x128xf32>,
      %cst_25 = arith.constant 0.000000e+00 : f32
      %22 = vector.broadcast %cst_25 : f32 to vector<2x1x128xf32>
      %c0_26 = arith.constant 0 : index
      %c0_27 = arith.constant 0 : index
      %c0_28 = arith.constant 0 : index
      %23 = vector.load %arg8[%c0_26, %c0_27, %c0_28] : memref<2x1x128xf32, #tpu.memory_space<vmem>>, vector<2x1x128xf32>
      tpu.vector_store %arg8[%c0_26, %c0_27, %c0_28], %22 {strides = array<i32>} : memref<2x1x128xf32, #tpu.memory_space<vmem>>, vector<2x1x128xf32>,
    } else {
    }
    %c0 = arith.constant 0 : index
    %c0_1 = arith.constant 0 : index
    %c0_2 = arith.constant 0 : index
    %3 = vector.load %arg3[%c0, %c0_1, %c0_2] : memref<2x8x128xf32, #tpu.memory_space<vmem>>, vector<2x8x128xf32>
    %c0_3 = arith.constant 0 : index
    %c0_4 = arith.constant 0 : index
    %c0_5 = arith.constant 0 : index
    %4 = vector.load %arg4[%c0_3, %c0_4, %c0_5] : memref<2x8x128xf32, #tpu.memory_space<vmem>>, vector<2x8x128xf32>
    %c0_6 = arith.constant 0 : index
    %c0_7 = arith.constant 0 : index
    %c0_8 = arith.constant 0 : index
    %5 = vector.load %arg7[%c0_6, %c0_7, %c0_8] : memref<2x1x128xf32, #tpu.memory_space<vmem>>, vector<2x1x128xf32>
    %6 = arith.mulf %4, %3 : vector<2x8x128xf32>
    %cst = arith.constant dense<0.000000e+00> : vector<2x128xf32>
    %7 = vector.multi_reduction <add>, %6, %cst [1] : vector<2x8x128xf32> to vector<2x128xf32>
    %8 = vector.shape_cast %7 : vector<2x128xf32> to vector<2x1x128xf32>
    %9 = arith.addf %5, %8 : vector<2x1x128xf32>
    %c0_9 = arith.constant 0 : index
    %c0_10 = arith.constant 0 : index
    %c0_11 = arith.constant 0 : index
    %10 = vector.load %arg7[%c0_9, %c0_10, %c0_11] : memref<2x1x128xf32, #tpu.memory_space<vmem>>, vector<2x1x128xf32>
    tpu.vector_store %arg7[%c0_9, %c0_10, %c0_11], %9 {strides = array<i32>} : memref<2x1x128xf32, #tpu.memory_space<vmem>>, vector<2x1x128xf32>,
    %c0_12 = arith.constant 0 : index
    %c0_13 = arith.constant 0 : index
    %c0_14 = arith.constant 0 : index
    %11 = vector.load %arg8[%c0_12, %c0_13, %c0_14] : memref<2x1x128xf32, #tpu.memory_space<vmem>>, vector<2x1x128xf32>
    %12 = arith.mulf %4, %4 : vector<2x8x128xf32>
    %cst_15 = arith.constant dense<0.000000e+00> : vector<2x128xf32>
    %13 = vector.multi_reduction <add>, %12, %cst_15 [1] : vector<2x8x128xf32> to vector<2x128xf32>
    %14 = vector.shape_cast %13 : vector<2x128xf32> to vector<2x1x128xf32>
    %15 = arith.addf %11, %14 : vector<2x1x128xf32>
    %c0_16 = arith.constant 0 : index
    %c0_17 = arith.constant 0 : index
    %c0_18 = arith.constant 0 : index
    %16 = vector.load %arg8[%c0_16, %c0_17, %c0_18] : memref<2x1x128xf32, #tpu.memory_space<vmem>>, vector<2x1x128xf32>
    tpu.vector_store %arg8[%c0_16, %c0_17, %c0_18], %15 {strides = array<i32>} : memref<2x1x128xf32, #tpu.memory_space<vmem>>, vector<2x1x128xf32>,
    %c0_i32_19 = arith.constant 0 : i32
    %17 = arith.cmpi eq, %arg2, %c0_i32_19 : i32
    %18 = arith.extui %17 : i1 to i32
    %c0_i32_20 = arith.constant 0 : i32
    %19 = arith.cmpi ne, %18, %c0_i32_20 : i32
    scf.if %19 {
      %c0_21 = arith.constant 0 : index
      %c0_22 = arith.constant 0 : index
      %c0_23 = arith.constant 0 : index
      %20 = vector.load %arg7[%c0_21, %c0_22, %c0_23] : memref<2x1x128xf32, #tpu.memory_space<vmem>>, vector<2x1x128xf32>
      %c0_24 = arith.constant 0 : index
      %c0_25 = arith.constant 0 : index
      %c0_26 = arith.constant 0 : index
      %c0_27 = arith.constant 0 : index
      %21 = vector.load %arg5[%c0_24, %c0_25, %c0_26, %c0_27] : memref<1x2x1x128xf32, #tpu.memory_space<vmem>>, vector<1x2x1x128xf32>
      %22 = vector.shape_cast %21 : vector<1x2x1x128xf32> to vector<2x1x128xf32>
      %23 = vector.shape_cast %20 : vector<2x1x128xf32> to vector<1x2x1x128xf32>
      tpu.vector_store %arg5[%c0_24, %c0_25, %c0_26, %c0_27], %23 {strides = array<i32>} : memref<1x2x1x128xf32, #tpu.memory_space<vmem>>, vector<1x2x1x128xf32>,
      %c0_28 = arith.constant 0 : index
      %c0_29 = arith.constant 0 : index
      %c0_30 = arith.constant 0 : index
      %24 = vector.load %arg8[%c0_28, %c0_29, %c0_30] : memref<2x1x128xf32, #tpu.memory_space<vmem>>, vector<2x1x128xf32>
      %c0_31 = arith.constant 0 : index
      %c0_32 = arith.constant 0 : index
      %c0_33 = arith.constant 0 : index
      %c0_34 = arith.constant 0 : index
      %25 = vector.load %arg6[%c0_31, %c0_32, %c0_33, %c0_34] : memref<1x2x1x128xf32, #tpu.memory_space<vmem>>, vector<1x2x1x128xf32>
      %26 = vector.shape_cast %25 : vector<1x2x1x128xf32> to vector<2x1x128xf32>
      %27 = vector.shape_cast %24 : vector<2x1x128xf32> to vector<1x2x1x128xf32>
      tpu.vector_store %arg6[%c0_31, %c0_32, %c0_33, %c0_34], %27 {strides = array<i32>} : memref<1x2x1x128xf32, #tpu.memory_space<vmem>>, vector<1x2x1x128xf32>,
    } else {
    }
    return
  }
  func.func @transform_0(%arg0: i32, %arg1: i32, %arg2: i32) -> (i32, i32, i32) {
    %c0_i32 = arith.constant 0 : i32
    %c0_i32_0 = arith.constant 0 : i32
    return %arg1, %arg2, %c0_i32 : i32, i32, i32
  }
  func.func @transform_1(%arg0: i32, %arg1: i32, %arg2: i32) -> (i32, i32, i32) {
    %c0_i32 = arith.constant 0 : i32
    %c0_i32_0 = arith.constant 0 : i32
    return %arg1, %arg2, %c0_i32 : i32, i32, i32
  }
  func.func @transform_2(%arg0: i32, %arg1: i32, %arg2: i32) -> (i32, i32, i32, i32) {
    %c0_i32 = arith.constant 0 : i32
    %c0_i32_0 = arith.constant 0 : i32
    %c0_i32_1 = arith.constant 0 : i32
    return %arg0, %arg1, %c0_i32, %c0_i32_0 : i32, i32, i32, i32
  }
  func.func @transform_3(%arg0: i32, %arg1: i32, %arg2: i32) -> (i32, i32, i32, i32) {
    %c0_i32 = arith.constant 0 : i32
    %c0_i32_0 = arith.constant 0 : i32
    %c0_i32_1 = arith.constant 0 : i32
    return %arg0, %arg1, %c0_i32, %c0_i32_0 : i32, i32, i32, i32
  }
}

</mosaic_0001>

<llo_original>
// kernel: scale_head.1
$region0: #{scale_head.1}
  #allocation0 [shape = 'u32[]', space=smem, size = 0x4, offset = 0x4, fixed_abs, tag = 'smem constant byte address 0x4 - core index']
  #allocation1 [shape = 'u32[72,128]{1,0:T(1,128)}', space=vmem, size = 0x9000, scoped, tag = 'internal scratch']
  #allocation2 [shape = 'f32[2,1,128]{2,1,0:T(1,128)}', space=vmem, size = 0x400, scoped, tag = 'scratch operand']
  #allocation3 [shape = 'f32[2,1,128]{2,1,0:T(1,128)}', space=vmem, size = 0x400, scoped, tag = 'scratch operand']
  %s0 = inlined_call_operand.vmem [shape: f32[2,8,128], index: 0, kind: input, shape index: {}]
  %s1 = inlined_call_operand.vmem [shape: f32[2,8,128], index: 1, kind: input, shape index: {}]
  %s2 = inlined_call_operand.vmem [shape: f32[1,2,1,128], index: 2, kind: output, shape index: {0}]
  %s3 = inlined_call_operand.vmem [shape: f32[1,2,1,128], index: 3, kind: output, shape index: {1}]
  %4 = xla_tuple %s2, %s3
  %s5 = sld [smem:[#allocation0]]
  $region34: #{scale_head.1} parent=0
    _
  %s7 = ssub.s32 1, %s5
  %s8 = scalar_select 0, %s7, %s5
  // Predicated region
  $region2: #{scale_head.1} parent=0 // pred_check
    _
  $region3: #{scale_head.1} parent=0 // pred_check_branch
    %10 = sbr.rel (0) target = $region5
  $region4: #{scale_head.1} parent=0 // pred_region
    _
  $region5: #{scale_head.1} parent=0 // pred_fallthru
    _
  // Predicated region
  $region6: #{scale_head.1} parent=0 // pred_check
    _
  $region7: #{scale_head.1} parent=0 // pred_check_branch
    %12 = sbr.rel (0) target = $region9
  $region8: #{scale_head.1} parent=0 // pred_region
    _
  $region9: #{scale_head.1} parent=0 // pred_fallthru
    _
  %p13 = scmp.eq.s32.totalorder 0, 0
  // Predicated region
  $region10: #{scale_head.1} parent=0 // pred_check
    %p14 = pneg %p13
  $region11: #{scale_head.1} parent=0 // pred_check_branch
    %16 = sbr.rel (%p14) target = $region13
  $region12: #{scale_head.1} parent=0 // pred_region
    %17 = vst [vmem:[#allocation2] sm:$0x1] 0.0
    %18 = vst [vmem:[#allocation2 + $0x1] sm:$0x1] 0.0
    %19 = vst [vmem:[#allocation3] sm:$0x1] 0.0
    %20 = vst [vmem:[#allocation3 + $0x1] sm:$0x1] 0.0
  $region13: #{scale_head.1} parent=0 // pred_fallthru
    _
  %v21 = vld [vmem:[%s0] sm:$0xff]
  %v22 = vld [vmem:[%s0 + $0x8] sm:$0xff]
  %v23 = vld [vmem:[%s1] sm:$0xff]
  %v24 = vld [vmem:[%s1 + $0x8] sm:$0xff]
  %v25 = vld [vmem:[#allocation2] sm:$0x1]
  %v26 = vld [vmem:[#allocation2 + $0x1] sm:$0x1]
  %v27 = vmul.f32 %v23, %v21
  %v28 = vmul.f32 %v24, %v22
  %v29 = vrot.slane %v27, 4
  %v30 = vadd.f32 %v27, %v29
  %v31 = vrot.slane %v30, 2
  %v32 = vadd.f32 %v30, %v31
  %v33 = vrot.slane %v32, 1
  %v34 = vadd.f32 %v32, %v33
  %v35 = vrot.slane %v28, 4
  %v36 = vadd.f32 %v28, %v35
  %v37 = vrot.slane %v36, 2
  %v38 = vadd.f32 %v36, %v37
  %v39 = vrot.slane %v38, 1
  %v40 = vadd.f32 %v38, %v39
  %v41 = vadd.f32 %v25, %v34
  %v42 = vadd.f32 %v26, %v40
  %43 = vst [vmem:[#allocation2] sm:$0x1] %v41
  %44 = vst [vmem:[#allocation2 + $0x1] sm:$0x1] %v42
  %v45 = vld [vmem:[#allocation3] sm:$0x1]
  %v46 = vld [vmem:[#allocation3 + $0x1] sm:$0x1]
  %v47 = vmul.f32 %v23, %v23
  %v48 = vmul.f32 %v24, %v24
  %v49 = vrot.slane %v47, 4
  %v50 = vadd.f32 %v47, %v49
  %v51 = vrot.slane %v50, 2
  %v52 = vadd.f32 %v50, %v51
  %v53 = vrot.slane %v52, 1
  %v54 = vadd.f32 %v52, %v53
  %v55 = vrot.slane %v48, 4
  %v56 = vadd.f32 %v48, %v55
  %v57 = vrot.slane %v56, 2
  %v58 = vadd.f32 %v56, %v57
  %v59 = vrot.slane %v58, 1
  %v60 = vadd.f32 %v58, %v59
  %v61 = vadd.f32 %v45, %v54
  %v62 = vadd.f32 %v46, %v60
  %63 = vst [vmem:[#allocation3] sm:$0x1] %v61
  %64 = vst [vmem:[#allocation3 + $0x1] sm:$0x1] %v62
  // Predicated region
  $region14: #{scale_head.1} parent=0 // pred_check
    %p65 = pneg %p13
  $region15: #{scale_head.1} parent=0 // pred_check_branch
    %67 = sbr.rel (%p65) target = $region17
  $region16: #{scale_head.1} parent=0 // pred_region
    %v68 = vld [vmem:[#allocation2] sm:$0x1]
    %v69 = vld [vmem:[#allocation2 + $0x1] sm:$0x1]
    %70 = vst [vmem:[%s2] sm:$0x1] %v68
    %71 = vst [vmem:[%s2 + $0x1] sm:$0x1] %v69
    %v72 = vld [vmem:[#allocation3] sm:$0x1]
    %v73 = vld [vmem:[#allocation3 + $0x1] sm:$0x1]
    %74 = vst [vmem:[%s3] sm:$0x1] %v72
    %75 = vst [vmem:[%s3 + $0x1] sm:$0x1] %v73
  $region17: #{scale_head.1} parent=0 // pred_fallthru
    _
  // Predicated region
  $region18: #{scale_head.1} parent=0 // pred_check
    _
  $region19: #{scale_head.1} parent=0 // pred_check_branch
    %77 = sbr.rel (0) target = $region21
  $region20: #{scale_head.1} parent=0 // pred_region
    _
  $region21: #{scale_head.1} parent=0 // pred_fallthru
    _
  // Predicated region
  $region22: #{scale_head.1} parent=0 // pred_check
    _
  $region23: #{scale_head.1} parent=0 // pred_check_branch
    %79 = sbr.rel (0) target = $region25
  $region24: #{scale_head.1} parent=0 // pred_region
    _
  $region25: #{scale_head.1} parent=0 // pred_fallthru
    _
  // Predicated region
  $region26: #{scale_head.1} parent=0 // pred_check
    _
  $region27: #{scale_head.1} parent=0 // pred_check_branch
    %81 = sbr.rel (0) target = $region29
  $region28: #{scale_head.1} parent=0 // pred_region
    _
  $region29: #{scale_head.1} parent=0 // pred_fallthru
    _
  // Predicated region
  $region30: #{scale_head.1} parent=0 // pred_check
    _
  $region31: #{scale_head.1} parent=0 // pred_check_branch
    %83 = sbr.rel (0) target = $region33
  $region32: #{scale_head.1} parent=0 // pred_region
    _
  $region33: #{scale_head.1} parent=0 // pred_fallthru
    _

</llo_original>
